<compile_context>
chip_gen: v6e
topology: v6e:2x2x1
jax: 0.10.0
libtpu: 0.0.40
codegen_flags: <defaults>
</compile_context>

<pallas_src>
import functools

import jax
import jax.numpy as jnp
from jax.experimental import pallas as pl
from jax.experimental.pallas import tpu as pltpu

NEG_SLOPE = 0.01   # nn.LeakyReLU default negative_slope
H1_PAD = 128       # zero-pad hidden-1 (64) to a lane-dense 128; math unchanged


def _leaky_relu(x):
    # 0 < slope < 1  =>  leaky_relu(x) == max(x, slope * x): one vmul + one vmax.
    return jnp.maximum(x, NEG_SLOPE * x)


def dqn1_kernel(x_ref, w1_ref, b1_ref, w2_ref, b2_ref, w3_ref, b3_ref, o_ref):
    cdt = w1_ref.dtype                      # MXU input dtype (bf16 default, f32 opt.)
    x = x_ref[...].astype(cdt)              # cast in-kernel; x streamed at its own dtype
    # fc1 + LeakyReLU (f32 accumulation on the MXU, bias/activation in f32)
    h1 = jnp.dot(x, w1_ref[...], preferred_element_type=jnp.float32) + b1_ref[...]
    h1 = _leaky_relu(h1).astype(cdt)
    # fc2 + LeakyReLU (K = 128 after hidden-1 padding -> full MXU depth on v5e)
    h2 = jnp.dot(h1, w2_ref[...], preferred_element_type=jnp.float32) + b2_ref[...]
    h2 = _leaky_relu(h2).astype(cdt)
    # fc3 (no activation); narrow out_dim store (masked vst) -- cheaper than the
    # 16x HBM writeback a 128-lane-padded output would cost.
    out = jnp.dot(h2, w3_ref[...], preferred_element_type=jnp.float32) + b3_ref[...]
    o_ref[...] = out.astype(o_ref.dtype)


def _round_up(n, m):
    return ((n + m - 1) // m) * m


def prepare_params(params, compute_dtype=jnp.bfloat16):
    """One-time weight prep, hoisted out of the per-call hot path:
       * zero-pad hidden-1 64 -> 128 (w1 cols, b1, w2 rows) -- math unchanged,
       * cast weights to the MXU compute dtype; biases stay f32 (added post-matmul)."""
    w1, b1, w2, b2, w3, b3 = params
    h1 = w1.shape[1]
    if h1 < H1_PAD:
        w1 = jnp.pad(w1, ((0, 0), (0, H1_PAD - h1)))
        b1 = jnp.pad(b1, ((0, 0), (0, H1_PAD - h1)))
        w2 = jnp.pad(w2, ((0, H1_PAD - h1), (0, 0)))
    return (w1.astype(compute_dtype), b1.astype(jnp.float32),
            w2.astype(compute_dtype), b2.astype(jnp.float32),
            w3.astype(compute_dtype), b3.astype(jnp.float32))


@functools.partial(jax.jit, static_argnames=("batch_tile",))
def dqn1_forward(x, prepared_params, *, batch_tile=512):
    """x: (B, ...) flattened to (B, F) like torch's x.view(B, -1)."""
    w1, b1, w2, b2, w3, b3 = prepared_params
    B = x.shape[0]
    x2d = x.reshape(B, -1)
    F = x2d.shape[1]
    out_dim = w3.shape[1]

    # Minimal batch padding: only to the sublane granule of x's dtype, never to the
    # batch tile. The ragged last grid block is handled by Pallas (masked out-writes).
    granule = 8 if x2d.dtype.itemsize >= 4 else 16
    B_pad = _round_up(B, granule)
    if B_pad != B:
        x2d = jnp.pad(x2d, ((0, B_pad - B), (0, 0)))

    # Batch tile: as large as batch_tile, but keep >= 4 grid steps for big batches
    # so v7x's 2 TensorCores each get >= 2 pipelined steps on the parallel axis.
    if B_pad <= batch_tile:
        TB = B_pad
    else:
        TB = batch_tile
        while pl.cdiv(B_pad, TB) < 4 and TB >= 2 * granule:
            TB //= 2
        TB = max(granule, (TB // granule) * granule)
    grid = (pl.cdiv(B_pad, TB),)

    # Weights/biases: full blocks, constant index map -> DMA'd once, VMEM-resident.
    pinned = lambda a: pl.BlockSpec(a.shape, lambda i: (0, 0))

    out = pl.pallas_call(
        dqn1_kernel,
        out_shape=jax.ShapeDtypeStruct((B_pad, out_dim), jnp.float32),
        grid=grid,
        in_specs=[
            pl.BlockSpec((TB, F), lambda i: (i, 0)),   # x: batch-tiled, pipelined
            pinned(w1), pinned(b1),
            pinned(w2), pinned(b2),
            pinned(w3), pinned(b3),
        ],
        out_specs=pl.BlockSpec((TB, out_dim), lambda i: (i, 0)),
        compiler_params=pltpu.CompilerParams(
            dimension_semantics=("parallel",),          # batch axis -> 2 TCs on v7x
        ),
    )(x2d, w1, b1, w2, b2, w3, b3)

    return out[:B] if B_pad != B else out


def init_params(key, in_features, out_features):
    """Deterministic synthetic params. Weights stored as (in, out)."""
    k1, k2, k3, k4, k5, k6 = jax.random.split(key, 6)
    scale = 0.05
    w1 = scale * jax.random.normal(k1, (in_features, 64), jnp.float32)
    b1 = scale * jax.random.normal(k2, (1, 64), jnp.float32)
    w2 = scale * jax.random.normal(k3, (64, 128), jnp.float32)
    b2 = scale * jax.random.normal(k4, (1, 128), jnp.float32)
    w3 = scale * jax.random.normal(k5, (128, out_features), jnp.float32)
    b3 = scale * jax.random.normal(k6, (1, out_features), jnp.float32)
    return (w1, b1, w2, b2, w3, b3)


def reference_forward(x, params):
    """Pure-JAX reference (same math as the torch module) for sanity checking."""
    w1, b1, w2, b2, w3, b3 = params
    x2d = x.reshape(x.shape[0], -1).astype(jnp.float32)
    h1 = jax.nn.leaky_relu(x2d @ w1 + b1, NEG_SLOPE)
    h2 = jax.nn.leaky_relu(h1 @ w2 + b2, NEG_SLOPE)
    return h2 @ w3 + b3


if __name__ == "__main__":
    key = jax.random.PRNGKey(0)
    kx, kp, kxb = jax.random.split(key, 3)

    # Small DQN-style input: batch=4, (C,H,W)=(2,4,4) -> flat dim 32, 8 actions.
    B, C, H, W = 4, 2, 4, 4
    in_features = C * H * W   # 32
    out_features = 8

    x = jax.random.normal(kx, (B, C, H, W), jnp.float32)
    params = init_params(kp, in_features, out_features)
    ref = reference_forward(x, params)

    # 1) f32 compute path: tight check of kernel math (padding B 4->8, single tile).
    p_f32 = prepare_params(params, jnp.float32)
    out_f32 = jax.block_until_ready(dqn1_forward(x, p_f32))
    assert out_f32.shape == (B, out_features)
    assert jnp.allclose(out_f32, ref, atol=1e-5, rtol=1e-5)

    # 2) Default bf16 compute path (f32 accumulation); loose tolerance.
    p_bf16 = prepare_params(params)   # bf16 default
    out_bf16 = jax.block_until_ready(dqn1_forward(x, p_bf16))
    assert jnp.allclose(out_bf16, ref, atol=5e-2, rtol=5e-2)

    # 3) Larger, awkward batch: exercises multi-step pipelined grid with a ragged
    #    last block (B=520 -> TB=128, grid=(5,), last block partially masked).
    BL = 520
    x_big = jax.random.normal(kxb, (BL, in_features), jnp.float32)
    ref_big = reference_forward(x_big, params)
    out_big = jax.block_until_ready(dqn1_forward(x_big, p_bf16))
    assert out_big.shape == (BL, out_features)
    assert jnp.allclose(out_big, ref_big, atol=5e-2, rtol=5e-2)

    print("KERNEL_OK")
</pallas_src>

<mosaic_0001>
module attributes {stable_mosaic.version = 11 : i64} {
  func.func @dqn1_kernel(%arg0: i32, %arg1: memref<8x32xf32, #tpu.memory_space<vmem>>, %arg2: memref<32x128xf32, #tpu.memory_space<vmem>>, %arg3: memref<1x128xf32, #tpu.memory_space<vmem>>, %arg4: memref<128x128xf32, #tpu.memory_space<vmem>>, %arg5: memref<1x128xf32, #tpu.memory_space<vmem>>, %arg6: memref<128x8xf32, #tpu.memory_space<vmem>>, %arg7: memref<1x8xf32, #tpu.memory_space<vmem>>, %arg8: memref<8x8xf32, #tpu.memory_space<vmem>>) attributes {dimension_semantics = [#tpu.dimension_semantics<parallel>], iteration_bounds = array<i64: 1>, scalar_prefetch = 0 : i64, scratch_operands = 0 : i64, tpu.core_type = #tpu.core_type<tc>, window_params = [{transform_indices = @transform_0, window_bounds = array<i64: 8, 32>}, {pipeline_mode = #tpu.pipeline_mode<synchronous>, transform_indices = @transform_1, window_bounds = array<i64: 32, 128>}, {pipeline_mode = #tpu.pipeline_mode<synchronous>, transform_indices = @transform_2, window_bounds = array<i64: 1, 128>}, {pipeline_mode = #tpu.pipeline_mode<synchronous>, transform_indices = @transform_3, window_bounds = array<i64: 128, 128>}, {pipeline_mode = #tpu.pipeline_mode<synchronous>, transform_indices = @transform_4, window_bounds = array<i64: 1, 128>}, {pipeline_mode = #tpu.pipeline_mode<synchronous>, transform_indices = @transform_5, window_bounds = array<i64: 128, 8>}, {pipeline_mode = #tpu.pipeline_mode<synchronous>, transform_indices = @transform_6, window_bounds = array<i64: 1, 8>}, {transform_indices = @transform_7, window_bounds = array<i64: 8, 8>}]} {
    %c0 = arith.constant 0 : index
    %c0_0 = arith.constant 0 : index
    %0 = vector.load %arg1[%c0, %c0_0] : memref<8x32xf32, #tpu.memory_space<vmem>>, vector<8x32xf32>
    %c0_1 = arith.constant 0 : index
    %c0_2 = arith.constant 0 : index
    %1 = vector.load %arg2[%c0_1, %c0_2] : memref<32x128xf32, #tpu.memory_space<vmem>>, vector<32x128xf32>
    %cst = arith.constant dense<0.000000e+00> : vector<8x128xf32>
    %2 = tpu.matmul %0, %1, %cst {dimension_numbers = #tpu.dot_dimension_numbers<[1], [0], [0], [1], [0, 0, 1, 1], [], []>} : vector<8x32xf32>, vector<32x128xf32>, vector<8x128xf32> -> vector<8x128xf32>
    %c0_3 = arith.constant 0 : index
    %c0_4 = arith.constant 0 : index
    %3 = vector.load %arg3[%c0_3, %c0_4] : memref<1x128xf32, #tpu.memory_space<vmem>>, vector<1x128xf32>
    %4 = vector.broadcast %3 : vector<1x128xf32> to vector<8x128xf32>
    %5 = arith.addf %2, %4 : vector<8x128xf32>
    %cst_5 = arith.constant 0.00999999977 : f32
    %6 = vector.broadcast %cst_5 : f32 to vector<8x128xf32>
    %7 = arith.mulf %6, %5 : vector<8x128xf32>
    %8 = arith.maximumf %5, %7 : vector<8x128xf32>
    %c0_6 = arith.constant 0 : index
    %c0_7 = arith.constant 0 : index
    %9 = vector.load %arg4[%c0_6, %c0_7] : memref<128x128xf32, #tpu.memory_space<vmem>>, vector<128x128xf32>
    %cst_8 = arith.constant dense<0.000000e+00> : vector<8x128xf32>
    %10 = tpu.matmul %8, %9, %cst_8 {dimension_numbers = #tpu.dot_dimension_numbers<[1], [0], [0], [1], [0, 0, 1, 1], [], []>} : vector<8x128xf32>, vector<128x128xf32>, vector<8x128xf32> -> vector<8x128xf32>
    %c0_9 = arith.constant 0 : index
    %c0_10 = arith.constant 0 : index
    %11 = vector.load %arg5[%c0_9, %c0_10] : memref<1x128xf32, #tpu.memory_space<vmem>>, vector<1x128xf32>
    %12 = vector.broadcast %11 : vector<1x128xf32> to vector<8x128xf32>
    %13 = arith.addf %10, %12 : vector<8x128xf32>
    %cst_11 = arith.constant 0.00999999977 : f32
    %14 = vector.broadcast %cst_11 : f32 to vector<8x128xf32>
    %15 = arith.mulf %14, %13 : vector<8x128xf32>
    %16 = arith.maximumf %13, %15 : vector<8x128xf32>
    %c0_12 = arith.constant 0 : index
    %c0_13 = arith.constant 0 : index
    %17 = vector.load %arg6[%c0_12, %c0_13] : memref<128x8xf32, #tpu.memory_space<vmem>>, vector<128x8xf32>
    %cst_14 = arith.constant dense<0.000000e+00> : vector<8x8xf32>
    %18 = tpu.matmul %16, %17, %cst_14 {dimension_numbers = #tpu.dot_dimension_numbers<[1], [0], [0], [1], [0, 0, 1, 1], [], []>} : vector<8x128xf32>, vector<128x8xf32>, vector<8x8xf32> -> vector<8x8xf32>
    %c0_15 = arith.constant 0 : index
    %c0_16 = arith.constant 0 : index
    %19 = vector.load %arg7[%c0_15, %c0_16] : memref<1x8xf32, #tpu.memory_space<vmem>>, vector<1x8xf32>
    %20 = vector.broadcast %19 : vector<1x8xf32> to vector<8x8xf32>
    %21 = arith.addf %18, %20 : vector<8x8xf32>
    %c0_17 = arith.constant 0 : index
    %c0_18 = arith.constant 0 : index
    %22 = vector.load %arg8[%c0_17, %c0_18] : memref<8x8xf32, #tpu.memory_space<vmem>>, vector<8x8xf32>
    tpu.vector_store %arg8[%c0_17, %c0_18], %21 {strides = array<i32>} : memref<8x8xf32, #tpu.memory_space<vmem>>, vector<8x8xf32>,
    return
  }
  func.func @transform_0(%arg0: i32) -> (i32, i32) {
    %c0_i32 = arith.constant 0 : i32
    %c0_i32_0 = arith.constant 0 : i32
    return %arg0, %c0_i32 : i32, i32
  }
  func.func @transform_1(%arg0: i32) -> (i32, i32) {
    %c0_i32 = arith.constant 0 : i32
    %c0_i32_0 = arith.constant 0 : i32
    %c0_i32_1 = arith.constant 0 : i32
    return %c0_i32, %c0_i32_0 : i32, i32
  }
  func.func @transform_2(%arg0: i32) -> (i32, i32) {
    %c0_i32 = arith.constant 0 : i32
    %c0_i32_0 = arith.constant 0 : i32
    %c0_i32_1 = arith.constant 0 : i32
    return %c0_i32, %c0_i32_0 : i32, i32
  }
  func.func @transform_3(%arg0: i32) -> (i32, i32) {
    %c0_i32 = arith.constant 0 : i32
    %c0_i32_0 = arith.constant 0 : i32
    %c0_i32_1 = arith.constant 0 : i32
    return %c0_i32, %c0_i32_0 : i32, i32
  }
  func.func @transform_4(%arg0: i32) -> (i32, i32) {
    %c0_i32 = arith.constant 0 : i32
    %c0_i32_0 = arith.constant 0 : i32
    %c0_i32_1 = arith.constant 0 : i32
    return %c0_i32, %c0_i32_0 : i32, i32
  }
  func.func @transform_5(%arg0: i32) -> (i32, i32) {
    %c0_i32 = arith.constant 0 : i32
    %c0_i32_0 = arith.constant 0 : i32
    %c0_i32_1 = arith.constant 0 : i32
    return %c0_i32, %c0_i32_0 : i32, i32
  }
  func.func @transform_6(%arg0: i32) -> (i32, i32) {
    %c0_i32 = arith.constant 0 : i32
    %c0_i32_0 = arith.constant 0 : i32
    %c0_i32_1 = arith.constant 0 : i32
    return %c0_i32, %c0_i32_0 : i32, i32
  }
  func.func @transform_7(%arg0: i32) -> (i32, i32) {
    %c0_i32 = arith.constant 0 : i32
    %c0_i32_0 = arith.constant 0 : i32
    return %arg0, %c0_i32 : i32, i32
  }
}

</mosaic_0001>

<llo_original>
// kernel: dqn1_forward.1
$region0: #{dqn1_forward.1}
  #allocation0 [shape = 'u32[]', space=smem, size = 0x4, offset = 0x4, fixed_abs, tag = 'smem constant byte address 0x4 - core index']
  #allocation1 [shape = 'u32[144,128]{1,0:T(1,128)}', space=vmem, size = 0x12000, scoped, tag = 'internal scratch']
  %s0 = inlined_call_operand.vmem [shape: f32[8,32], index: 0, kind: input, shape index: {}]
  %s1 = inlined_call_operand.vmem [shape: f32[32,128], index: 1, kind: input, shape index: {}]
  %s2 = inlined_call_operand.vmem [shape: f32[1,128], index: 2, kind: input, shape index: {}]
  %s3 = inlined_call_operand.vmem [shape: f32[128,128], index: 3, kind: input, shape index: {}]
  %s4 = inlined_call_operand.vmem [shape: f32[1,128], index: 4, kind: input, shape index: {}]
  %s5 = inlined_call_operand.vmem [shape: f32[128,8], index: 5, kind: input, shape index: {}]
  %s6 = inlined_call_operand.vmem [shape: f32[1,8], index: 6, kind: input, shape index: {}]
  %s7 = inlined_call_operand.vmem [shape: f32[8,8], index: 7, kind: output, shape index: {}]
  %s8 = sld [smem:[#allocation0]]
  $region38: #{dqn1_forward.1} parent=0
    _
  %s10 = ssub.s32 1, %s8
  %s11 = scalar_select 0, %s10, %s8
  // Predicated region
  $region2: #{dqn1_forward.1} parent=0 // pred_check
    _
  $region3: #{dqn1_forward.1} parent=0 // pred_check_branch
    %13 = sbr.rel (0) target = $region5
  $region4: #{dqn1_forward.1} parent=0 // pred_region
    _
  $region5: #{dqn1_forward.1} parent=0 // pred_fallthru
    _
  // Predicated region
  $region6: #{dqn1_forward.1} parent=0 // pred_check
    _
  $region7: #{dqn1_forward.1} parent=0 // pred_check_branch
    %15 = sbr.rel (0) target = $region9
  $region8: #{dqn1_forward.1} parent=0 // pred_region
    _
  $region9: #{dqn1_forward.1} parent=0 // pred_fallthru
    _
  // Predicated region
  $region10: #{dqn1_forward.1} parent=0 // pred_check
    _
  $region11: #{dqn1_forward.1} parent=0 // pred_check_branch
    %17 = sbr.rel (0) target = $region13
  $region12: #{dqn1_forward.1} parent=0 // pred_region
    _
  $region13: #{dqn1_forward.1} parent=0 // pred_fallthru
    _
  // Predicated region
  $region14: #{dqn1_forward.1} parent=0 // pred_check
    _
  $region15: #{dqn1_forward.1} parent=0 // pred_check_branch
    %19 = sbr.rel (0) target = $region17
  $region16: #{dqn1_forward.1} parent=0 // pred_region
    _
  $region17: #{dqn1_forward.1} parent=0 // pred_fallthru
    _
  // Predicated region
  $region18: #{dqn1_forward.1} parent=0 // pred_check
    _
  $region19: #{dqn1_forward.1} parent=0 // pred_check_branch
    %21 = sbr.rel (0) target = $region21
  $region20: #{dqn1_forward.1} parent=0 // pred_region
    _
  $region21: #{dqn1_forward.1} parent=0 // pred_fallthru
    _
  // Predicated region
  $region22: #{dqn1_forward.1} parent=0 // pred_check
    _
  $region23: #{dqn1_forward.1} parent=0 // pred_check_branch
    %23 = sbr.rel (0) target = $region25
  $region24: #{dqn1_forward.1} parent=0 // pred_region
    _
  $region25: #{dqn1_forward.1} parent=0 // pred_fallthru
    _
  // Predicated region
  $region26: #{dqn1_forward.1} parent=0 // pred_check
    _
  $region27: #{dqn1_forward.1} parent=0 // pred_check_branch
    %25 = sbr.rel (0) target = $region29
  $region28: #{dqn1_forward.1} parent=0 // pred_region
    _
  $region29: #{dqn1_forward.1} parent=0 // pred_fallthru
    _
  %v26 = vld [vmem:[%s0] sm:$0xff]
  %v27 = vld [vmem:[%s1] sm:$0xff]
  %v28 = vld [vmem:[%s1 + $0x8] sm:$0xff]
  %v29 = vld [vmem:[%s1 + $0x10] sm:$0xff]
  %v30 = vld [vmem:[%s1 + $0x18] sm:$0xff]
  %v31 = vld [vmem:[%s2] sm:$0x1]
  %v33 = vlaneseq
  %v34 = vshrl.u32 %v33, 7
  %v35 = vsub.s32 0, %v34
  %v36 = vrot.slane %v31, %v35
  %vm38 = vcmask 261120
  %v40 = vsel %vm38, %v26, 0
  %42 = vmatprep.subr.mxu0 0.0
  %43 = vmatpush1.msra.mxu0 0.0
  %44 = vmatprep.subr.mxu0 0.0
  %45 = vmatpush1.msra.mxu0 0.0
  %46 = vmatprep.subr.mxu0 0.0
  %47 = vmatpush1.msra.mxu0 0.0
  %48 = vmatprep.subr.mxu0 0.0
  %49 = vmatpush1.msra.mxu0 0.0
  %50 = vmatprep.subr.mxu0 0.0
  %51 = vmatpush1.msra.mxu0 0.0
  %52 = vmatprep.subr.mxu0 0.0
  %53 = vmatpush1.msra.mxu0 0.0
  %54 = vmatprep.subr.mxu0 0.0
  %55 = vmatpush1.msra.mxu0 0.0
  %56 = vmatprep.subr.mxu0 0.0
  %57 = vmatpush1.msra.mxu0 0.0
  %58 = vmatprep.subr.mxu0 0.0
  %59 = vmatpush1.msra.mxu0 0.0
  %60 = vmatprep.subr.mxu0 0.0
  %61 = vmatpush1.msra.mxu0 0.0
  %62 = vmatprep.subr.mxu0 0.0
  %63 = vmatpush1.msra.mxu0 0.0
  %64 = vmatprep.subr.mxu0 0.0
  %65 = vmatpush1.msra.mxu0 0.0
  %66 = vmatprep.subr.mxu0 0.0
  %67 = vmatpush1.msra.mxu0 %v30
  %68 = vmatprep.subr.mxu0 0.0
  %69 = vmatpush1.msra.mxu0 %v29
  %70 = vmatprep.subr.mxu0 0.0
  %71 = vmatpush1.msra.mxu0 %v28
  %72 = vmatprep.subr.mxu0 0.0
  %73 = vmatpush1.msra.mxu0 %v27
  %74 = vmatprep.subr.mxu0 0.0
  %75 = vmatpush2.msra.mxu0 0.0
  %76 = vmatprep.subr.mxu0 0.0
  %77 = vmatpush2.msra.mxu0 0.0
  %78 = vmatprep.subr.mxu0 0.0
  %79 = vmatpush2.msra.mxu0 0.0
  %80 = vmatprep.subr.mxu0 0.0
  %81 = vmatpush2.msra.mxu0 0.0
  %82 = vmatprep.subr.mxu0 0.0
  %83 = vmatpush2.msra.mxu0 0.0
  %84 = vmatprep.subr.mxu0 0.0
  %85 = vmatpush2.msra.mxu0 0.0
  %86 = vmatprep.subr.mxu0 0.0
  %87 = vmatpush2.msra.mxu0 0.0
  %88 = vmatprep.subr.mxu0 0.0
  %89 = vmatpush2.msra.mxu0 0.0
  %90 = vmatprep.subr.mxu0 0.0
  %91 = vmatpush2.msra.mxu0 0.0
  %92 = vmatprep.subr.mxu0 0.0
  %93 = vmatpush2.msra.mxu0 0.0
  %94 = vmatprep.subr.mxu0 0.0
  %95 = vmatpush2.msra.mxu0 0.0
  %96 = vmatprep.subr.mxu0 0.0
  %97 = vmatpush2.msra.mxu0 0.0
  %98 = vmatprep.subr.mxu0 0.0
  %99 = vmatpush2.msra.mxu0 0.0
  %100 = vmatprep.subr.mxu0 0.0
  %101 = vmatpush2.msra.mxu0 0.0
  %102 = vmatprep.subr.mxu0 0.0
  %103 = vmatpush2.msra.mxu0 0.0
  %104 = vmatprep.subr.mxu0 0.0
  %105 = vmatpush2.msra.mxu0 0.0
  %106 = vmatprep.mubr.f32.mxu0 0.0
  %107 = vmatmul.mubr.f32.gmra.mxu0 %v40
  %v108 = vpop.f32.mrf.mxu0
  %v109 = vadd.f32 %v36, %v108
  %v110 = vpop.f32.mrf.mxu0
  %111 = vdwg.mxu0
  %v112 = vmul.f32 %v109, 0.01
  %v113 = vmax.f32 %v109, %v112
  %v114 = vld [vmem:[%s3] sm:$0xff]
  %v115 = vld [vmem:[%s3 + $0x8] sm:$0xff]
  %v116 = vld [vmem:[%s3 + $0x10] sm:$0xff]
  %v117 = vld [vmem:[%s3 + $0x18] sm:$0xff]
  %v118 = vld [vmem:[%s3 + $0x20] sm:$0xff]
  %v119 = vld [vmem:[%s3 + $0x28] sm:$0xff]
  %v120 = vld [vmem:[%s3 + $0x30] sm:$0xff]
  %v121 = vld [vmem:[%s3 + $0x38] sm:$0xff]
  %v122 = vld [vmem:[%s3 + $0x40] sm:$0xff]
  %v123 = vld [vmem:[%s3 + $0x48] sm:$0xff]
  %v124 = vld [vmem:[%s3 + $0x50] sm:$0xff]
  %v125 = vld [vmem:[%s3 + $0x58] sm:$0xff]
  %v126 = vld [vmem:[%s3 + $0x60] sm:$0xff]
  %v127 = vld [vmem:[%s3 + $0x68] sm:$0xff]
  %v128 = vld [vmem:[%s3 + $0x70] sm:$0xff]
  %v129 = vld [vmem:[%s3 + $0x78] sm:$0xff]
  %v130 = vld [vmem:[%s4] sm:$0x1]
  %v132 = vlaneseq
  %v133 = vshrl.u32 %v132, 7
  %v134 = vsub.s32 0, %v133
  %v135 = vrot.slane %v130, %v134
  %137 = vmatprep.subr.mxu0 0.0
  %138 = vmatpush1.msra.mxu0 %v129
  %139 = vmatprep.subr.mxu0 0.0
  %140 = vmatpush1.msra.mxu0 %v128
  %141 = vmatprep.subr.mxu0 0.0
  %142 = vmatpush1.msra.mxu0 %v127
  %143 = vmatprep.subr.mxu0 0.0
  %144 = vmatpush1.msra.mxu0 %v126
  %145 = vmatprep.subr.mxu0 0.0
  %146 = vmatpush1.msra.mxu0 %v125
  %147 = vmatprep.subr.mxu0 0.0
  %148 = vmatpush1.msra.mxu0 %v124
  %149 = vmatprep.subr.mxu0 0.0
  %150 = vmatpush1.msra.mxu0 %v123
  %151 = vmatprep.subr.mxu0 0.0
  %152 = vmatpush1.msra.mxu0 %v122
  %153 = vmatprep.subr.mxu0 0.0
  %154 = vmatpush1.msra.mxu0 %v121
  %155 = vmatprep.subr.mxu0 0.0
  %156 = vmatpush1.msra.mxu0 %v120
  %157 = vmatprep.subr.mxu0 0.0
  %158 = vmatpush1.msra.mxu0 %v119
  %159 = vmatprep.subr.mxu0 0.0
  %160 = vmatpush1.msra.mxu0 %v118
  %161 = vmatprep.subr.mxu0 0.0
  %162 = vmatpush1.msra.mxu0 %v117
  %163 = vmatprep.subr.mxu0 0.0
  %164 = vmatpush1.msra.mxu0 %v116
  %165 = vmatprep.subr.mxu0 0.0
  %166 = vmatpush1.msra.mxu0 %v115
  %167 = vmatprep.subr.mxu0 0.0
  %168 = vmatpush1.msra.mxu0 %v114
  %169 = vmatprep.subr.mxu0 0.0
  %170 = vmatpush2.msra.mxu0 0.0
  %171 = vmatprep.subr.mxu0 0.0
  %172 = vmatpush2.msra.mxu0 0.0
  %173 = vmatprep.subr.mxu0 0.0
  %174 = vmatpush2.msra.mxu0 0.0
  %175 = vmatprep.subr.mxu0 0.0
  %176 = vmatpush2.msra.mxu0 0.0
  %177 = vmatprep.subr.mxu0 0.0
  %178 = vmatpush2.msra.mxu0 0.0
  %179 = vmatprep.subr.mxu0 0.0
  %180 = vmatpush2.msra.mxu0 0.0
  %181 = vmatprep.subr.mxu0 0.0
  %182 = vmatpush2.msra.mxu0 0.0
  %183 = vmatprep.subr.mxu0 0.0
  %184 = vmatpush2.msra.mxu0 0.0
  %185 = vmatprep.subr.mxu0 0.0
  %186 = vmatpush2.msra.mxu0 0.0
  %187 = vmatprep.subr.mxu0 0.0
  %188 = vmatpush2.msra.mxu0 0.0
  %189 = vmatprep.subr.mxu0 0.0
  %190 = vmatpush2.msra.mxu0 0.0
  %191 = vmatprep.subr.mxu0 0.0
  %192 = vmatpush2.msra.mxu0 0.0
  %193 = vmatprep.subr.mxu0 0.0
  %194 = vmatpush2.msra.mxu0 0.0
  %195 = vmatprep.subr.mxu0 0.0
  %196 = vmatpush2.msra.mxu0 0.0
  %197 = vmatprep.subr.mxu0 0.0
  %198 = vmatpush2.msra.mxu0 0.0
  %199 = vmatprep.subr.mxu0 0.0
  %200 = vmatpush2.msra.mxu0 0.0
  %201 = vmatprep.mubr.f32.mxu0 0.0
  %202 = vmatmul.mubr.f32.gmra.mxu0 %v113
  %v203 = vpop.f32.mrf.mxu0
  %v204 = vadd.f32 %v135, %v203
  %v205 = vpop.f32.mrf.mxu0
  %206 = vdwg.mxu0
  %v207 = vmul.f32 %v204, 0.01
  %v208 = vmax.f32 %v204, %v207
  %v209 = vld [vmem:[%s5] sm:$0xff]
  %v210 = vld [vmem:[%s5 + $0x8] sm:$0xff]
  %v211 = vld [vmem:[%s5 + $0x10] sm:$0xff]
  %v212 = vld [vmem:[%s5 + $0x18] sm:$0xff]
  %v213 = vld [vmem:[%s5 + $0x20] sm:$0xff]
  %v214 = vld [vmem:[%s5 + $0x28] sm:$0xff]
  %v215 = vld [vmem:[%s5 + $0x30] sm:$0xff]
  %v216 = vld [vmem:[%s5 + $0x38] sm:$0xff]
  %v217 = vld [vmem:[%s5 + $0x40] sm:$0xff]
  %v218 = vld [vmem:[%s5 + $0x48] sm:$0xff]
  %v219 = vld [vmem:[%s5 + $0x50] sm:$0xff]
  %v220 = vld [vmem:[%s5 + $0x58] sm:$0xff]
  %v221 = vld [vmem:[%s5 + $0x60] sm:$0xff]
  %v222 = vld [vmem:[%s5 + $0x68] sm:$0xff]
  %v223 = vld [vmem:[%s5 + $0x70] sm:$0xff]
  %v224 = vld [vmem:[%s5 + $0x78] sm:$0xff]
  %v225 = vld [vmem:[%s6] sm:$0x1]
  %v227 = vlaneseq
  %v228 = vshrl.u32 %v227, 7
  %v229 = vsub.s32 0, %v228
  %v230 = vrot.slane %v225, %v229
  %232 = vmatprep.subr.mxu0 0.0
  %233 = vmatpush1.msra.mxu0 %v224
  %234 = vmatprep.subr.mxu0 0.0
  %235 = vmatpush1.msra.mxu0 %v223
  %236 = vmatprep.subr.mxu0 0.0
  %237 = vmatpush1.msra.mxu0 %v222
  %238 = vmatprep.subr.mxu0 0.0
  %239 = vmatpush1.msra.mxu0 %v221
  %240 = vmatprep.subr.mxu0 0.0
  %241 = vmatpush1.msra.mxu0 %v220
  %242 = vmatprep.subr.mxu0 0.0
  %243 = vmatpush1.msra.mxu0 %v219
  %244 = vmatprep.subr.mxu0 0.0
  %245 = vmatpush1.msra.mxu0 %v218
  %246 = vmatprep.subr.mxu0 0.0
  %247 = vmatpush1.msra.mxu0 %v217
  %248 = vmatprep.subr.mxu0 0.0
  %249 = vmatpush1.msra.mxu0 %v216
  %250 = vmatprep.subr.mxu0 0.0
  %251 = vmatpush1.msra.mxu0 %v215
  %252 = vmatprep.subr.mxu0 0.0
  %253 = vmatpush1.msra.mxu0 %v214
  %254 = vmatprep.subr.mxu0 0.0
  %255 = vmatpush1.msra.mxu0 %v213
  %256 = vmatprep.subr.mxu0 0.0
  %257 = vmatpush1.msra.mxu0 %v212
  %258 = vmatprep.subr.mxu0 0.0
  %259 = vmatpush1.msra.mxu0 %v211
  %260 = vmatprep.subr.mxu0 0.0
  %261 = vmatpush1.msra.mxu0 %v210
  %262 = vmatprep.subr.mxu0 0.0
  %263 = vmatpush1.msra.mxu0 %v209
  %264 = vmatprep.subr.mxu0 0.0
  %265 = vmatpush2.msra.mxu0 0.0
  %266 = vmatprep.subr.mxu0 0.0
  %267 = vmatpush2.msra.mxu0 0.0
  %268 = vmatprep.subr.mxu0 0.0
  %269 = vmatpush2.msra.mxu0 0.0
  %270 = vmatprep.subr.mxu0 0.0
  %271 = vmatpush2.msra.mxu0 0.0
  %272 = vmatprep.subr.mxu0 0.0
  %273 = vmatpush2.msra.mxu0 0.0
  %274 = vmatprep.subr.mxu0 0.0
  %275 = vmatpush2.msra.mxu0 0.0
  %276 = vmatprep.subr.mxu0 0.0
  %277 = vmatpush2.msra.mxu0 0.0
  %278 = vmatprep.subr.mxu0 0.0
  %279 = vmatpush2.msra.mxu0 0.0
  %280 = vmatprep.subr.mxu0 0.0
  %281 = vmatpush2.msra.mxu0 0.0
  %282 = vmatprep.subr.mxu0 0.0
  %283 = vmatpush2.msra.mxu0 0.0
  %284 = vmatprep.subr.mxu0 0.0
  %285 = vmatpush2.msra.mxu0 0.0
  %286 = vmatprep.subr.mxu0 0.0
  %287 = vmatpush2.msra.mxu0 0.0
  %288 = vmatprep.subr.mxu0 0.0
  %289 = vmatpush2.msra.mxu0 0.0
  %290 = vmatprep.subr.mxu0 0.0
  %291 = vmatpush2.msra.mxu0 0.0
  %292 = vmatprep.subr.mxu0 0.0
  %293 = vmatpush2.msra.mxu0 0.0
  %294 = vmatprep.subr.mxu0 0.0
  %295 = vmatpush2.msra.mxu0 0.0
  %296 = vmatprep.mubr.f32.mxu0 0.0
  %297 = vmatmul.mubr.f32.gmra.mxu0 %v208
  %v298 = vpop.f32.mrf.mxu0
  %v299 = vadd.f32 %v230, %v298
  %v300 = vpop.f32.mrf.mxu0
  %301 = vdwg.mxu0
  %vm302 = vcmask 64512
  %303 = vst.msk [vmem:[%s7] sm:$0xff] %vm302, %v299
  // Predicated region
  $region30: #{dqn1_forward.1} parent=0 // pred_check
    _
  $region31: #{dqn1_forward.1} parent=0 // pred_check_branch
    %305 = sbr.rel (0) target = $region33
  $region32: #{dqn1_forward.1} parent=0 // pred_region
    _
  $region33: #{dqn1_forward.1} parent=0 // pred_fallthru
    _
  // Predicated region
  $region34: #{dqn1_forward.1} parent=0 // pred_check
    _
  $region35: #{dqn1_forward.1} parent=0 // pred_check_branch
    %307 = sbr.rel (0) target = $region37
  $region36: #{dqn1_forward.1} parent=0 // pred_region
    _
  $region37: #{dqn1_forward.1} parent=0 // pred_fallthru
    _

</llo_original>
